<compile_context>
chip_gen: v7x
topology: tpu7x:2x2x1
jax: 0.10.0
libtpu: 0.0.40
codegen_flags: <defaults>
</compile_context>

<pallas_src>
import functools

import jax
import jax.numpy as jnp
from jax.experimental import pallas as pl
from jax.experimental.pallas import tpu as pltpu

# ---- "args" for the synthetic module -------------------------------------
HID_SIZE = 32
ACTION_DIM = 4
INPUT_SHAPE = 16
LAYERNORM = True
HID_ACTIVATION = "relu"     # 'relu' or 'tanh'
LOG_STD_MIN = -20.0
LOG_STD_MAX = 2.0
LN_EPS = 1e-5               # torch.nn.LayerNorm default


def _round_up(n, m):
    return ((n + m - 1) // m) * m


def _activation(x, kind):
    if kind == "relu":
        return jnp.maximum(x, 0.0)
    elif kind == "tanh":
        return jnp.tanh(x)
    else:
        raise ValueError(kind)


# ---------------------------------------------------------------------------
# Kernel
# ---------------------------------------------------------------------------
def _mlp_agent_kernel(
    x_ref,        # (TB, IN)         input tile
    p_ref,        # (P_ROWS, LANES)  packed params (lane-dense)
    out_ref,      # (TB, LANES)      packed output: [mean|log_std|0..|h|0..]
    *,
    layernorm: bool,
    hid_activation: str,
    in_dim: int,
    hid: int,
    act: int,
    lanes: int,
    r_w1: int, r_w2: int, r_wh: int,
    r_b1: int, r_g: int, r_beta: int, r_b2: int, r_bh: int,
):
    x = x_ref[...].astype(jnp.float32)                       # (TB, IN)

    # ---- fc1: (TB, IN) @ (IN, LANES) -> (TB, LANES); lanes [hid:) are zero --
    w1t = p_ref[r_w1:r_w1 + in_dim, :]
    b1 = p_ref[r_b1:r_b1 + 1, :]
    h1 = jnp.dot(x, w1t, preferred_element_type=jnp.float32) + b1

    # ---- optional LayerNorm over the (valid) feature axis ------------------
    if layernorm:
        g = p_ref[r_g:r_g + 1, :]
        beta = p_ref[r_beta:r_beta + 1, :]
        inv_n = 1.0 / hid
        # padding lanes are exactly zero -> sums over 128 lanes, divide by hid.
        mu = jnp.sum(h1, axis=-1, keepdims=True) * inv_n
        ex2 = jnp.sum(h1 * h1, axis=-1, keepdims=True) * inv_n
        var = ex2 - mu * mu
        h1 = (h1 - mu) * jax.lax.rsqrt(var + LN_EPS)
        h1 = h1 * g + beta          # gamma/beta zero-padded -> lanes [hid:) = 0
    h1 = _activation(h1, hid_activation)          # relu/tanh keep zeros zero

    # ---- fc2 + activation (LANES-wide, padded weight rows/cols are zero) ---
    w2t = p_ref[r_w2:r_w2 + lanes, :]
    b2 = p_ref[r_b2:r_b2 + 1, :]
    h2 = jnp.dot(h1, w2t, preferred_element_type=jnp.float32) + b2
    h2 = _activation(h2, hid_activation)          # (TB, LANES), lanes [hid:) = 0

    # ---- fused heads + identity passthrough: emits the packed output slab --
    #   lanes [0:act)        = mean
    #   lanes [act:2*act)    = log_std (raw, pre-squash)
    #   lanes [hid:2*hid)    = h2      (identity columns in the weight block)
    wht = p_ref[r_wh:r_wh + lanes, :]
    bh = p_ref[r_bh:r_bh + 1, :]
    out = jnp.dot(h2, wht, preferred_element_type=jnp.float32) + bh  # (TB, LANES)

    # tanh-squash + rescale applied only to the log_std lanes [act, 2*act)
    lane = jax.lax.broadcasted_iota(jnp.int32, out.shape, 1)
    squashed = LOG_STD_MIN + 0.5 * (LOG_STD_MAX - LOG_STD_MIN) * (jnp.tanh(out) + 1.0)
    out = jnp.where((lane >= act) & (lane < 2 * act), squashed, out)

    out_ref[...] = out.astype(out_ref.dtype)      # single unmasked full-vreg store


# ---------------------------------------------------------------------------
# One-time parameter packing (do this once, NOT per forward call)
# ---------------------------------------------------------------------------
def prepare_params(params):
    """Pack (w1,b1,gamma,beta,w2,b2,wm,bm,ws,bs) into one lane-dense slab.

    Slab is (rows, LANES) f32, LANES = 128 (for hid<=64). Row layout:
        [r_w1 : r_w1+IN   ]  w1.T  zero-padded to LANES cols
        [r_w2 : r_w2+LANES]  w2.T  zero-padded rows+cols
        [r_wh : r_wh+LANES]  fused head weight:
                               cols [0:act)=wm.T, [act:2act)=ws.T,
                               cols [hid:2hid)=I_hid (h2 passthrough), rest 0
        [r_b1]  b1     [r_g] gamma   [r_bt] beta
        [r_b2]  b2     [r_bh] fused head bias: [bm|bs|0...] (h2 lanes MUST be 0)
    """
    w1, b1, gamma, beta, w2, b2, wm, bm, ws, bs = params
    hid, in_dim = w1.shape
    act = wm.shape[0]
    assert 2 * act <= hid, "packing assumes 2*action_dim <= hid_size"
    lanes = max(128, _round_up(2 * hid, 128))

    r_w1 = 0
    r_w2 = _round_up(r_w1 + in_dim, 8)
    r_wh = _round_up(r_w2 + lanes, 8)
    r_b1 = _round_up(r_wh + lanes, 8)
    r_g = r_b1 + 1
    r_bt = r_g + 1
    r_b2 = r_bt + 1
    r_bh = r_b2 + 1
    rows = _round_up(r_bh + 1, 8)

    p = jnp.zeros((rows, lanes), jnp.float32)
    p = p.at[r_w1:r_w1 + in_dim, :hid].set(w1.T)
    p = p.at[r_w2:r_w2 + hid, :hid].set(w2.T)
    # fused head weight block
    p = p.at[r_wh:r_wh + hid, :act].set(wm.T)
    p = p.at[r_wh:r_wh + hid, act:2 * act].set(ws.T)
    p = p.at[r_wh:r_wh + hid, hid:2 * hid].set(jnp.eye(hid, dtype=jnp.float32))
    # biases / LN affine (all zero-padded in lanes [hid:))
    p = p.at[r_b1, :hid].set(b1)
    p = p.at[r_g, :hid].set(gamma)
    p = p.at[r_bt, :hid].set(beta)
    p = p.at[r_b2, :hid].set(b2)
    p = p.at[r_bh, :act].set(bm)
    p = p.at[r_bh, act:2 * act].set(bs)

    meta = dict(in_dim=in_dim, hid=hid, act=act, lanes=lanes,
                r_w1=r_w1, r_w2=r_w2, r_wh=r_wh,
                r_b1=r_b1, r_g=r_g, r_beta=r_bt, r_b2=r_b2, r_bh=r_bh)
    return p, meta


def _choose_tile_b(batch, max_tile=4096):
    """Single grid step unless the padded batch exceeds max_tile rows.

    The grid is a sequential loop on v5e/v6e (1 TC/chip), so splitting small
    batches is pure per-step overhead. Large batches use ~4096-row tiles
    (~85%+ of HBM roofline, well inside VMEM on every generation incl. v7x).
    """
    bp8 = _round_up(batch, 8)
    if bp8 <= max_tile:
        return bp8
    n_tiles = -(-bp8 // max_tile)
    return _round_up(-(-bp8 // n_tiles), 8)


# ---------------------------------------------------------------------------
# Forward wrapper
# ---------------------------------------------------------------------------
def mlp_agent_forward(inputs, packed_params, meta, *, layernorm=LAYERNORM,
                      hid_activation=HID_ACTIVATION, tile_b=None):
    """inputs: (B, IN) float32.  Returns (mean, log_std, h)."""
    B, F = inputs.shape
    hid, act, in_dim, lanes = meta["hid"], meta["act"], meta["in_dim"], meta["lanes"]
    assert F == in_dim

    if tile_b is None:
        tile_b = _choose_tile_b(B)
    grid_n = -(-B // tile_b)
    bp = grid_n * tile_b
    x = inputs
    if bp != B:
        x = jnp.pad(inputs, ((0, bp - B), (0, 0)))

    kernel = functools.partial(
        _mlp_agent_kernel,
        layernorm=layernorm, hid_activation=hid_activation,
        in_dim=in_dim, hid=hid, act=act, lanes=lanes,
        r_w1=meta["r_w1"], r_w2=meta["r_w2"], r_wh=meta["r_wh"],
        r_b1=meta["r_b1"], r_g=meta["r_g"], r_beta=meta["r_beta"],
        r_b2=meta["r_b2"], r_bh=meta["r_bh"],
    )

    # Advisory cost so XLA can overlap this tiny kernel with surrounding ops.
    flops = 2 * bp * (in_dim * lanes + lanes * lanes + lanes * lanes)
    transcendentals = bp * (lanes + hid)               # head tanh + rsqrt/acts
    bytes_accessed = (bp * (F + lanes) + packed_params.size) * 4
    cost = pl.CostEstimate(flops=flops, transcendentals=transcendentals,
                           bytes_accessed=bytes_accessed)

    out = pl.pallas_call(
        kernel,
        out_shape=jax.ShapeDtypeStruct((bp, lanes), jnp.float32),
        grid_spec=pl.GridSpec(
            grid=(grid_n,),
            in_specs=[
                pl.BlockSpec((tile_b, F), lambda i: (i, 0)),          # x tile
                pl.BlockSpec(packed_params.shape, lambda i: (0, 0)),  # params (resident)
            ],
            out_specs=pl.BlockSpec((tile_b, lanes), lambda i: (i, 0)),
        ),
        compiler_params=pltpu.CompilerParams(
            dimension_semantics=("arbitrary",),   # 1 step for small B; no-op otherwise
        ),
        cost_estimate=cost,
    )(x, packed_params)

    mean = out[:B, :act]
    log_std = out[:B, act:2 * act]
    h = out[:B, hid:2 * hid]
    return mean, log_std, h


# ---------------------------------------------------------------------------
# Synthetic params + pure-JAX reference
# ---------------------------------------------------------------------------
def init_params(key, input_shape=INPUT_SHAPE, hid=HID_SIZE, act_dim=ACTION_DIM):
    ks = jax.random.split(key, 8)
    w1 = jax.random.normal(ks[0], (hid, input_shape), jnp.float32) * 0.1
    b1 = jax.random.normal(ks[1], (hid,), jnp.float32) * 0.01
    gamma = jnp.ones((hid,), jnp.float32)
    beta = jnp.zeros((hid,), jnp.float32)
    w2 = jax.random.normal(ks[2], (hid, hid), jnp.float32) * 0.1
    b2 = jax.random.normal(ks[3], (hid,), jnp.float32) * 0.01
    wm = jax.random.normal(ks[4], (act_dim, hid), jnp.float32) * 0.1
    bm = jax.random.normal(ks[5], (act_dim,), jnp.float32) * 0.01
    ws = jax.random.normal(ks[6], (act_dim, hid), jnp.float32) * 0.1
    bs = jax.random.normal(ks[7], (act_dim,), jnp.float32) * 0.01
    return (w1, b1, gamma, beta, w2, b2, wm, bm, ws, bs)


def _reference_forward(inputs, params, layernorm=LAYERNORM,
                       hid_activation=HID_ACTIVATION):
    w1, b1, gamma, beta, w2, b2, wm, bm, ws, bs = params
    x = inputs @ w1.T + b1
    if layernorm:
        mu = x.mean(-1, keepdims=True)
        var = ((x - mu) ** 2).mean(-1, keepdims=True)
        x = (x - mu) / jnp.sqrt(var + LN_EPS) * gamma + beta
    x = _activation(x, hid_activation)
    h = _activation(x @ w2.T + b2, hid_activation)
    mean = h @ wm.T + bm
    log_std = jnp.tanh(h @ ws.T + bs)
    log_std = LOG_STD_MIN + 0.5 * (LOG_STD_MAX - LOG_STD_MIN) * (log_std + 1.0)
    return mean, log_std, h


if __name__ == "__main__":
    key = jax.random.PRNGKey(0)
    kp, kx = jax.random.split(key)

    B = 16  # e.g. batch * agent_num flattened, as the torch module receives
    params = init_params(kp)
    inputs = jax.random.normal(kx, (B, INPUT_SHAPE), jnp.float32)

    # One-time parameter packing (hoisted out of the per-call path).
    packed_params, meta = prepare_params(params)
    packed_params = jax.block_until_ready(packed_params)

    # hidden_state is unused by the forward pass of this (non-recurrent) agent.
    mean, log_std, h = mlp_agent_forward(inputs, packed_params, meta)
    jax.block_until_ready((mean, log_std, h))

    # sanity check against a pure-JAX reference
    rm, rl, rh = _reference_forward(inputs, params)
    assert jnp.allclose(mean, rm, atol=1e-5), "mean mismatch"
    assert jnp.allclose(log_std, rl, atol=1e-5), "log_std mismatch"
    assert jnp.allclose(h, rh, atol=1e-5), "h mismatch"

    print("KERNEL_OK")
</pallas_src>

<mosaic_0001>
module attributes {stable_mosaic.version = 11 : i64} {
  func.func @_mlp_agent_kernel(%arg0: i32, %arg1: memref<16x16xf32, #tpu.memory_space<vmem>>, %arg2: memref<280x128xf32, #tpu.memory_space<vmem>>, %arg3: memref<16x128xf32, #tpu.memory_space<vmem>>) attributes {dimension_semantics = [#tpu.dimension_semantics<arbitrary>], iteration_bounds = array<i64: 1>, scalar_prefetch = 0 : i64, scratch_operands = 0 : i64, tpu.core_type = #tpu.core_type<tc>, window_params = [{transform_indices = @transform_0, window_bounds = array<i64: 16, 16>}, {pipeline_mode = #tpu.pipeline_mode<synchronous>, transform_indices = @transform_1, window_bounds = array<i64: 280, 128>}, {transform_indices = @transform_2, window_bounds = array<i64: 16, 128>}]} {
    %c0 = arith.constant 0 : index
    %c0_0 = arith.constant 0 : index
    %0 = vector.load %arg1[%c0, %c0_0] : memref<16x16xf32, #tpu.memory_space<vmem>>, vector<16x16xf32>
    %c0_1 = arith.constant 0 : index
    %c0_2 = arith.constant 0 : index
    %1 = vector.load %arg2[%c0_1, %c0_2] : memref<280x128xf32, #tpu.memory_space<vmem>>, vector<16x128xf32>
    %c272 = arith.constant 272 : index
    %c0_3 = arith.constant 0 : index
    %2 = vector.load %arg2[%c272, %c0_3] : memref<280x128xf32, #tpu.memory_space<vmem>>, vector<1x128xf32>
    %cst = arith.constant dense<0.000000e+00> : vector<16x128xf32>
    %3 = tpu.matmul %0, %1, %cst {dimension_numbers = #tpu.dot_dimension_numbers<[1], [0], [0], [1], [0, 0, 1, 1], [], []>} : vector<16x16xf32>, vector<16x128xf32>, vector<16x128xf32> -> vector<16x128xf32>
    %4 = vector.broadcast %2 : vector<1x128xf32> to vector<16x128xf32>
    %5 = arith.addf %3, %4 : vector<16x128xf32>
    %c273 = arith.constant 273 : index
    %c0_4 = arith.constant 0 : index
    %6 = vector.load %arg2[%c273, %c0_4] : memref<280x128xf32, #tpu.memory_space<vmem>>, vector<1x128xf32>
    %c274 = arith.constant 274 : index
    %c0_5 = arith.constant 0 : index
    %7 = vector.load %arg2[%c274, %c0_5] : memref<280x128xf32, #tpu.memory_space<vmem>>, vector<1x128xf32>
    %cst_6 = arith.constant dense<0.000000e+00> : vector<16xf32>
    %8 = vector.multi_reduction <add>, %5, %cst_6 [1] : vector<16x128xf32> to vector<16xf32>
    %9 = vector.shape_cast %8 : vector<16xf32> to vector<16x1xf32>
    %cst_7 = arith.constant 3.125000e-02 : f32
    %10 = vector.broadcast %cst_7 : f32 to vector<16x1xf32>
    %11 = arith.mulf %9, %10 : vector<16x1xf32>
    %12 = arith.mulf %5, %5 : vector<16x128xf32>
    %cst_8 = arith.constant dense<0.000000e+00> : vector<16xf32>
    %13 = vector.multi_reduction <add>, %12, %cst_8 [1] : vector<16x128xf32> to vector<16xf32>
    %14 = vector.shape_cast %13 : vector<16xf32> to vector<16x1xf32>
    %cst_9 = arith.constant 3.125000e-02 : f32
    %15 = vector.broadcast %cst_9 : f32 to vector<16x1xf32>
    %16 = arith.mulf %14, %15 : vector<16x1xf32>
    %17 = arith.mulf %11, %11 : vector<16x1xf32>
    %18 = arith.subf %16, %17 : vector<16x1xf32>
    %19 = vector.broadcast %11 : vector<16x1xf32> to vector<16x128xf32>
    %20 = arith.subf %5, %19 : vector<16x128xf32>
    %cst_10 = arith.constant 9.99999974E-6 : f32
    %21 = vector.broadcast %cst_10 : f32 to vector<16x1xf32>
    %22 = arith.addf %18, %21 : vector<16x1xf32>
    %23 = math.rsqrt %22 : vector<16x1xf32>
    %24 = vector.broadcast %23 : vector<16x1xf32> to vector<16x128xf32>
    %25 = arith.mulf %20, %24 : vector<16x128xf32>
    %26 = vector.broadcast %6 : vector<1x128xf32> to vector<16x128xf32>
    %27 = arith.mulf %25, %26 : vector<16x128xf32>
    %28 = vector.broadcast %7 : vector<1x128xf32> to vector<16x128xf32>
    %29 = arith.addf %27, %28 : vector<16x128xf32>
    %cst_11 = arith.constant 0.000000e+00 : f32
    %30 = vector.broadcast %cst_11 : f32 to vector<16x128xf32>
    %31 = arith.maximumf %29, %30 : vector<16x128xf32>
    %c16 = arith.constant 16 : index
    %c0_12 = arith.constant 0 : index
    %32 = vector.load %arg2[%c16, %c0_12] : memref<280x128xf32, #tpu.memory_space<vmem>>, vector<128x128xf32>
    %c275 = arith.constant 275 : index
    %c0_13 = arith.constant 0 : index
    %33 = vector.load %arg2[%c275, %c0_13] : memref<280x128xf32, #tpu.memory_space<vmem>>, vector<1x128xf32>
    %cst_14 = arith.constant dense<0.000000e+00> : vector<16x128xf32>
    %34 = tpu.matmul %31, %32, %cst_14 {dimension_numbers = #tpu.dot_dimension_numbers<[1], [0], [0], [1], [0, 0, 1, 1], [], []>} : vector<16x128xf32>, vector<128x128xf32>, vector<16x128xf32> -> vector<16x128xf32>
    %35 = vector.broadcast %33 : vector<1x128xf32> to vector<16x128xf32>
    %36 = arith.addf %34, %35 : vector<16x128xf32>
    %cst_15 = arith.constant 0.000000e+00 : f32
    %37 = vector.broadcast %cst_15 : f32 to vector<16x128xf32>
    %38 = arith.maximumf %36, %37 : vector<16x128xf32>
    %c144 = arith.constant 144 : index
    %c0_16 = arith.constant 0 : index
    %39 = vector.load %arg2[%c144, %c0_16] : memref<280x128xf32, #tpu.memory_space<vmem>>, vector<128x128xf32>
    %c276 = arith.constant 276 : index
    %c0_17 = arith.constant 0 : index
    %40 = vector.load %arg2[%c276, %c0_17] : memref<280x128xf32, #tpu.memory_space<vmem>>, vector<1x128xf32>
    %cst_18 = arith.constant dense<0.000000e+00> : vector<16x128xf32>
    %41 = tpu.matmul %38, %39, %cst_18 {dimension_numbers = #tpu.dot_dimension_numbers<[1], [0], [0], [1], [0, 0, 1, 1], [], []>} : vector<16x128xf32>, vector<128x128xf32>, vector<16x128xf32> -> vector<16x128xf32>
    %42 = vector.broadcast %40 : vector<1x128xf32> to vector<16x128xf32>
    %43 = arith.addf %41, %42 : vector<16x128xf32>
    %44 = tpu.iota {dimensions = array<i32: 1>} : vector<16x128xi32>
    %45 = math.tanh %43 : vector<16x128xf32>
    %cst_19 = arith.constant 1.000000e+00 : f32
    %46 = vector.broadcast %cst_19 : f32 to vector<16x128xf32>
    %47 = arith.addf %45, %46 : vector<16x128xf32>
    %cst_20 = arith.constant 1.100000e+01 : f32
    %48 = vector.broadcast %cst_20 : f32 to vector<16x128xf32>
    %49 = arith.mulf %48, %47 : vector<16x128xf32>
    %cst_21 = arith.constant -2.000000e+01 : f32
    %50 = vector.broadcast %cst_21 : f32 to vector<16x128xf32>
    %51 = arith.addf %50, %49 : vector<16x128xf32>
    %c4_i32 = arith.constant 4 : i32
    %52 = vector.broadcast %c4_i32 : i32 to vector<16x128xi32>
    %53 = arith.cmpi sge, %44, %52 : vector<16x128xi32>
    %c8_i32 = arith.constant 8 : i32
    %54 = vector.broadcast %c8_i32 : i32 to vector<16x128xi32>
    %55 = arith.cmpi slt, %44, %54 : vector<16x128xi32>
    %56 = arith.andi %53, %55 : vector<16x128xi1>
    %57 = arith.select %56, %51, %43 : vector<16x128xi1>, vector<16x128xf32>
    %c0_22 = arith.constant 0 : index
    %c0_23 = arith.constant 0 : index
    %58 = vector.load %arg3[%c0_22, %c0_23] : memref<16x128xf32, #tpu.memory_space<vmem>>, vector<16x128xf32>
    tpu.vector_store %arg3[%c0_22, %c0_23], %57 {strides = array<i32>} : memref<16x128xf32, #tpu.memory_space<vmem>>, vector<16x128xf32>,
    return
  }
  func.func @transform_0(%arg0: i32) -> (i32, i32) {
    %c0_i32 = arith.constant 0 : i32
    %c0_i32_0 = arith.constant 0 : i32
    return %arg0, %c0_i32 : i32, i32
  }
  func.func @transform_1(%arg0: i32) -> (i32, i32) {
    %c0_i32 = arith.constant 0 : i32
    %c0_i32_0 = arith.constant 0 : i32
    %c0_i32_1 = arith.constant 0 : i32
    return %c0_i32, %c0_i32_0 : i32, i32
  }
  func.func @transform_2(%arg0: i32) -> (i32, i32) {
    %c0_i32 = arith.constant 0 : i32
    %c0_i32_0 = arith.constant 0 : i32
    return %arg0, %c0_i32 : i32, i32
  }
}

</mosaic_0001>

<llo_original>
// kernel: tpu_custom_call.1
$region0: #{tpu_custom_call.1}
  #allocation0 [shape = 'u32[]', space=smem, size = 0x4, offset = 0x4, fixed_abs, tag = 'smem constant byte address 0x4 - core index']
  #allocation1 [shape = 'u32[144,128]{1,0:T(1,128)}', space=vmem, size = 0x12000, scoped, tag = 'internal scratch']
  %s0 = inlined_call_operand.hbm [shape: f32[16,16], index: 0, kind: input, shape index: {}]
  %s1 = inlined_call_operand.hbm [shape: f32[280,128], index: 1, kind: input, shape index: {}]
  %s2 = inlined_call_operand.hbm [shape: f32[16,128], index: 2, kind: output, shape index: {}]
  %s3 = sld [smem:[#allocation0]]
  $region26: #{tpu_custom_call.1} parent=0
    _
  %s5 = ssub.s32 1, %s3
  %s6 = scalar_select 0, %s5, %s3
  $region1: #{tpu_custom_call.1} parent=0
    #allocation2 [shape = 'u8[8192]{0}', space=vmem, size = 0x2000, scoped, tag = 'input window, operand 0, single buffered']
    #allocation3 [shape = 's32[1]{0}', space=sflag, size = 0x4, scoped, tag = 'scoped memory for tpu_custom_call.1']
    #allocation4 [shape = 's32[1]{0}', space=sflag, size = 0x4, scoped, tag = 'scoped memory for tpu_custom_call.1']
    #allocation5 [shape = 'u8[143360]{0}', space=vmem, size = 0x23000, scoped, tag = 'input window, operand 1, single buffered']
    #allocation6 [shape = 's32[1]{0}', space=sflag, size = 0x4, scoped, tag = 'scoped memory for tpu_custom_call.1']
    #allocation7 [shape = 'u8[8192]{0}', space=vmem, size = 0x2000, scoped, tag = 'output window, operand 0, single buffered']
    %7 = vsyncpa [#allocation3], 0
    %8 = vsyncpa [#allocation6], 0
    %9 = vsyncpa [#allocation4], 0
    // Predicated region
    $region2: #{tpu_custom_call.1} parent=1 // pred_check
      _
    $region3: #{tpu_custom_call.1} parent=1 // pred_check_branch
      %11 = sbr.rel (0) target = $region5
    $region4: #{tpu_custom_call.1} parent=1 // pred_region
      %s13 = ssub.s32 256, 256
      %14 = vsyncadd [#allocation3], %s13
      %s15 = sshll.u32 [#allocation2], 4
      %s16 = int_to_ptr.vmem [resolvable:$true] %s15
      %21 = dma.hbm_to_vmem [thread:$0]  %s0, 256, %s16, [#allocation3], 128, 128, 8
    $region5: #{tpu_custom_call.1} parent=1 // pred_fallthru
      _
    // Predicated region
    $region6: #{tpu_custom_call.1} parent=1 // pred_check
      _
    $region7: #{tpu_custom_call.1} parent=1 // pred_check_branch
      %23 = sbr.rel (0) target = $region9
    $region8: #{tpu_custom_call.1} parent=1 // pred_region
      %s25 = ssub.s32 4480, 4480
      %26 = vsyncadd [#allocation6], %s25
      %s27 = sshll.u32 [#allocation5], 4
      %s28 = int_to_ptr.vmem [resolvable:$true] %s27
      %33 = dma.hbm_to_vmem [thread:$0]  %s1, 4480, %s28, [#allocation6], 128, 128, 8
    $region9: #{tpu_custom_call.1} parent=1 // pred_fallthru
      _
    // Predicated region
    $region10: #{tpu_custom_call.1} parent=1 // pred_check
      _
    $region11: #{tpu_custom_call.1} parent=1 // pred_check_branch
      %35 = sbr.rel (0) target = $region13
    $region12: #{tpu_custom_call.1} parent=1 // pred_region
      %36 = dma.done [#allocation3], 256
    $region13: #{tpu_custom_call.1} parent=1 // pred_fallthru
      _
    // Predicated region
    $region14: #{tpu_custom_call.1} parent=1 // pred_check
      _
    $region15: #{tpu_custom_call.1} parent=1 // pred_check_branch
      %38 = sbr.rel (0) target = $region17
    $region16: #{tpu_custom_call.1} parent=1 // pred_region
      %39 = dma.done [#allocation6], 4480
    $region17: #{tpu_custom_call.1} parent=1 // pred_fallthru
      _
    %v40 = vld [vmem:[#allocation2] sm:$0xff]
    %v41 = vld [vmem:[#allocation2 + $0x8] sm:$0xff]
    %v42 = vld [vmem:[#allocation5] sm:$0xff]
    %v43 = vld [vmem:[#allocation5 + $0x8] sm:$0xff]
    %v44 = vld [vmem:[#allocation5 + $0x110] sm:$0x1]
    %v45 = vlaneseq
    %v46 = vshrl.u32 %v45, 7
    %v47 = vsub.s32 0, %v46
    %v48 = vrot.slane %v44, %v47
    %vm49 = vcmask 130048
    %v51 = vsel %vm49, %v40, 0
    %v54 = vsel %vm49, %v41, 0
    %56 = vmatprep.subr.mxu0 0.0
    %57 = vmatpush1.msra.mxu0 %v42
    %58 = vmatprep.subr.mxu0 0.0
    %59 = vmatpush1.msra.mxu0 %v43
    %60 = vmatprep.subr.mxu0 0.0
    %61 = vmatpush1.msra.mxu0 0.0
    %62 = vmatprep.subr.mxu0 0.0
    %63 = vmatpush1.msra.mxu0 0.0
    %64 = vmatprep.subr.mxu0 0.0
    %65 = vmatpush1.msra.mxu0 0.0
    %66 = vmatprep.subr.mxu0 0.0
    %67 = vmatpush1.msra.mxu0 0.0
    %68 = vmatprep.subr.mxu0 0.0
    %69 = vmatpush1.msra.mxu0 0.0
    %70 = vmatprep.subr.mxu0 0.0
    %71 = vmatpush1.msra.mxu0 0.0
    %72 = vmatprep.subr.mxu0 0.0
    %73 = vmatpush1.msra.mxu0 0.0
    %74 = vmatprep.subr.mxu0 0.0
    %75 = vmatpush1.msra.mxu0 0.0
    %76 = vmatprep.subr.mxu0 0.0
    %77 = vmatpush1.msra.mxu0 0.0
    %78 = vmatprep.subr.mxu0 0.0
    %79 = vmatpush1.msra.mxu0 0.0
    %80 = vmatprep.subr.mxu0 0.0
    %81 = vmatpush1.msra.mxu0 0.0
    %82 = vmatprep.subr.mxu0 0.0
    %83 = vmatpush1.msra.mxu0 0.0
    %84 = vmatprep.subr.mxu0 0.0
    %85 = vmatpush1.msra.mxu0 0.0
    %86 = vmatprep.subr.mxu0 0.0
    %87 = vmatpush1.msra.mxu0 0.0
    %88 = vmatprep.subr.mxu0 0.0
    %89 = vmatpush1.msra.mxu0 0.0
    %90 = vmatprep.subr.mxu0 0.0
    %91 = vmatpush1.msra.mxu0 0.0
    %92 = vmatprep.subr.mxu0 0.0
    %93 = vmatpush1.msra.mxu0 0.0
    %94 = vmatprep.subr.mxu0 0.0
    %95 = vmatpush1.msra.mxu0 0.0
    %96 = vmatprep.subr.mxu0 0.0
    %97 = vmatpush1.msra.mxu0 0.0
    %98 = vmatprep.subr.mxu0 0.0
    %99 = vmatpush1.msra.mxu0 0.0
    %100 = vmatprep.subr.mxu0 0.0
    %101 = vmatpush1.msra.mxu0 0.0
    %102 = vmatprep.subr.mxu0 0.0
    %103 = vmatpush1.msra.mxu0 0.0
    %104 = vmatprep.subr.mxu0 0.0
    %105 = vmatpush1.msra.mxu0 0.0
    %106 = vmatprep.subr.mxu0 0.0
    %107 = vmatpush1.msra.mxu0 0.0
    %108 = vmatprep.subr.mxu0 0.0
    %109 = vmatpush1.msra.mxu0 0.0
    %110 = vmatprep.subr.mxu0 0.0
    %111 = vmatpush1.msra.mxu0 0.0
    %112 = vmatprep.subr.mxu0 0.0
    %113 = vmatpush1.msra.mxu0 0.0
    %114 = vmatprep.subr.mxu0 0.0
    %115 = vmatpush1.msra.mxu0 0.0
    %116 = vmatprep.subr.mxu0 0.0
    %117 = vmatpush1.msra.mxu0 0.0
    %118 = vmatprep.subr.mxu0 0.0
    %119 = vmatpush1.msra.mxu0 0.0
    %120 = vmatprep.mubr.f32.mxu0 0.0
    %121 = vmatmul.mubr.f32.gmra.mrb[0].mxu0 %v51
    %v122 = vpop.f32.mrb[0].mxu0
    %v123 = vadd.f32 %v48, %v122
    %v124 = vpop.f32.mrb[0].mxu0
    %125 = vmatprep.mubr.f32.mxu0 0.0
    %126 = vmatmul.mubr.f32.gmra.mrb[0].mxu0 %v54
    %v127 = vpop.f32.mrb[0].mxu0
    %v128 = vadd.f32 %v48, %v127
    %v129 = vpop.f32.mrb[0].mxu0
    %130 = vdwg.mxu0
    %v131 = vld [vmem:[#allocation5 + $0x111] sm:$0x1]
    %v132 = vld [vmem:[#allocation5 + $0x112] sm:$0x1]
    %133 = vadd.xlane.f32.xlu0 %v123
    %v134 = vpop.xlane.xlu0 %133
    %135 = vadd.xlane.f32.xlu0 %v128
    %v136 = vpop.xlane.xlu0 %135
    %v137 = vmul.f32 %v134, 0.03125
    %v138 = vmul.f32 %v136, 0.03125
    %v139 = vmul.f32 %v123, %v123
    %v140 = vmul.f32 %v128, %v128
    %141 = vadd.xlane.f32.xlu0 %v139
    %v142 = vpop.xlane.xlu0 %141
    %143 = vadd.xlane.f32.xlu0 %v140
    %v144 = vpop.xlane.xlu0 %143
    %v145 = vmul.f32 %v142, 0.03125
    %v146 = vmul.f32 %v144, 0.03125
    %v147 = vmul.f32 %v137, %v137
    %v148 = vmul.f32 %v138, %v138
    %v149 = vsub.f32 %v145, %v147
    %v150 = vsub.f32 %v146, %v148
    %v151 = vsub.f32 %v123, %v137
    %v152 = vsub.f32 %v128, %v138
    %v153 = vadd.f32 %v149, 1e-05
    %v154 = vadd.f32 %v150, 1e-05
    %v155 = vrsqrt.pop %v153
    %v156 = vrsqrt.pop %v154
    %v157 = vmul.f32 %v151, %v155
    %v158 = vmul.f32 %v152, %v156
    %v159 = vlaneseq
    %v160 = vshrl.u32 %v159, 7
    %v161 = vsub.s32 0, %v160
    %v162 = vrot.slane %v131, %v161
    %v163 = vmul.f32 %v157, %v162
    %v164 = vmul.f32 %v158, %v162
    %v165 = vlaneseq
    %v166 = vshrl.u32 %v165, 7
    %v167 = vsub.s32 0, %v166
    %v168 = vrot.slane %v132, %v167
    %v169 = vadd.f32 %v163, %v168
    %v170 = vadd.f32 %v164, %v168
    %v171 = vmax.f32 %v169, 0.0
    %v172 = vmax.f32 %v170, 0.0
    %v173 = vld [vmem:[#allocation5 + $0x10] sm:$0xff]
    %v174 = vld [vmem:[#allocation5 + $0x18] sm:$0xff]
    %v175 = vld [vmem:[#allocation5 + $0x20] sm:$0xff]
    %v176 = vld [vmem:[#allocation5 + $0x28] sm:$0xff]
    %v177 = vld [vmem:[#allocation5 + $0x30] sm:$0xff]
    %v178 = vld [vmem:[#allocation5 + $0x38] sm:$0xff]
    %v179 = vld [vmem:[#allocation5 + $0x40] sm:$0xff]
    %v180 = vld [vmem:[#allocation5 + $0x48] sm:$0xff]
    %v181 = vld [vmem:[#allocation5 + $0x50] sm:$0xff]
    %v182 = vld [vmem:[#allocation5 + $0x58] sm:$0xff]
    %v183 = vld [vmem:[#allocation5 + $0x60] sm:$0xff]
    %v184 = vld [vmem:[#allocation5 + $0x68] sm:$0xff]
    %v185 = vld [vmem:[#allocation5 + $0x70] sm:$0xff]
    %v186 = vld [vmem:[#allocation5 + $0x78] sm:$0xff]
    %v187 = vld [vmem:[#allocation5 + $0x80] sm:$0xff]
    %v188 = vld [vmem:[#allocation5 + $0x88] sm:$0xff]
    %v189 = vld [vmem:[#allocation5 + $0x113] sm:$0x1]
    %v190 = vlaneseq
    %v191 = vshrl.u32 %v190, 7
    %v192 = vsub.s32 0, %v191
    %v193 = vrot.slane %v189, %v192
    %194 = vmatprep.subr.mxu0 0.0
    %195 = vmatpush1.msra.mxu0 %v173
    %196 = vmatprep.subr.mxu0 0.0
    %197 = vmatpush1.msra.mxu0 %v174
    %198 = vmatprep.subr.mxu0 0.0
    %199 = vmatpush1.msra.mxu0 %v175
    %200 = vmatprep.subr.mxu0 0.0
    %201 = vmatpush1.msra.mxu0 %v176
    %202 = vmatprep.subr.mxu0 0.0
    %203 = vmatpush1.msra.mxu0 %v177
    %204 = vmatprep.subr.mxu0 0.0
    %205 = vmatpush1.msra.mxu0 %v178
    %206 = vmatprep.subr.mxu0 0.0
    %207 = vmatpush1.msra.mxu0 %v179
    %208 = vmatprep.subr.mxu0 0.0
    %209 = vmatpush1.msra.mxu0 %v180
    %210 = vmatprep.subr.mxu0 0.0
    %211 = vmatpush1.msra.mxu0 %v181
    %212 = vmatprep.subr.mxu0 0.0
    %213 = vmatpush1.msra.mxu0 %v182
    %214 = vmatprep.subr.mxu0 0.0
    %215 = vmatpush1.msra.mxu0 %v183
    %216 = vmatprep.subr.mxu0 0.0
    %217 = vmatpush1.msra.mxu0 %v184
    %218 = vmatprep.subr.mxu0 0.0
    %219 = vmatpush1.msra.mxu0 %v185
    %220 = vmatprep.subr.mxu0 0.0
    %221 = vmatpush1.msra.mxu0 %v186
    %222 = vmatprep.subr.mxu0 0.0
    %223 = vmatpush1.msra.mxu0 %v187
    %224 = vmatprep.subr.mxu0 0.0
    %225 = vmatpush1.msra.mxu0 %v188
    %226 = vmatprep.subr.mxu0 0.0
    %227 = vmatpush1.msra.mxu0 0.0
    %228 = vmatprep.subr.mxu0 0.0
    %229 = vmatpush1.msra.mxu0 0.0
    %230 = vmatprep.subr.mxu0 0.0
    %231 = vmatpush1.msra.mxu0 0.0
    %232 = vmatprep.subr.mxu0 0.0
    %233 = vmatpush1.msra.mxu0 0.0
    %234 = vmatprep.subr.mxu0 0.0
    %235 = vmatpush1.msra.mxu0 0.0
    %236 = vmatprep.subr.mxu0 0.0
    %237 = vmatpush1.msra.mxu0 0.0
    %238 = vmatprep.subr.mxu0 0.0
    %239 = vmatpush1.msra.mxu0 0.0
    %240 = vmatprep.subr.mxu0 0.0
    %241 = vmatpush1.msra.mxu0 0.0
    %242 = vmatprep.subr.mxu0 0.0
    %243 = vmatpush1.msra.mxu0 0.0
    %244 = vmatprep.subr.mxu0 0.0
    %245 = vmatpush1.msra.mxu0 0.0
    %246 = vmatprep.subr.mxu0 0.0
    %247 = vmatpush1.msra.mxu0 0.0
    %248 = vmatprep.subr.mxu0 0.0
    %249 = vmatpush1.msra.mxu0 0.0
    %250 = vmatprep.subr.mxu0 0.0
    %251 = vmatpush1.msra.mxu0 0.0
    %252 = vmatprep.subr.mxu0 0.0
    %253 = vmatpush1.msra.mxu0 0.0
    %254 = vmatprep.subr.mxu0 0.0
    %255 = vmatpush1.msra.mxu0 0.0
    %256 = vmatprep.subr.mxu0 0.0
    %257 = vmatpush1.msra.mxu0 0.0
    %258 = vmatprep.mubr.f32.mxu0 0.0
    %259 = vmatmul.mubr.f32.gmra.mrb[0].mxu0 %v171
    %v260 = vpop.f32.mrb[0].mxu0
    %v261 = vadd.f32 %v193, %v260
    %v262 = vpop.f32.mrb[0].mxu0
    %263 = vmatprep.mubr.f32.mxu0 0.0
    %264 = vmatmul.mubr.f32.gmra.mrb[0].mxu0 %v172
    %v265 = vpop.f32.mrb[0].mxu0
    %v266 = vadd.f32 %v193, %v265
    %v267 = vpop.f32.mrb[0].mxu0
    %268 = vdwg.mxu0
    %v269 = vmax.f32 %v261, 0.0
    %v270 = vmax.f32 %v266, 0.0
    %v271 = vld [vmem:[#allocation5 + $0x90] sm:$0xff]
    %v272 = vld [vmem:[#allocation5 + $0x98] sm:$0xff]
    %v273 = vld [vmem:[#allocation5 + $0xa0] sm:$0xff]
    %v274 = vld [vmem:[#allocation5 + $0xa8] sm:$0xff]
    %v275 = vld [vmem:[#allocation5 + $0xb0] sm:$0xff]
    %v276 = vld [vmem:[#allocation5 + $0xb8] sm:$0xff]
    %v277 = vld [vmem:[#allocation5 + $0xc0] sm:$0xff]
    %v278 = vld [vmem:[#allocation5 + $0xc8] sm:$0xff]
    %v279 = vld [vmem:[#allocation5 + $0xd0] sm:$0xff]
    %v280 = vld [vmem:[#allocation5 + $0xd8] sm:$0xff]
    %v281 = vld [vmem:[#allocation5 + $0xe0] sm:$0xff]
    %v282 = vld [vmem:[#allocation5 + $0xe8] sm:$0xff]
    %v283 = vld [vmem:[#allocation5 + $0xf0] sm:$0xff]
    %v284 = vld [vmem:[#allocation5 + $0xf8] sm:$0xff]
    %v285 = vld [vmem:[#allocation5 + $0x100] sm:$0xff]
    %v286 = vld [vmem:[#allocation5 + $0x108] sm:$0xff]
    %v287 = vld [vmem:[#allocation5 + $0x114] sm:$0x1]
    %v288 = vlaneseq
    %v289 = vshrl.u32 %v288, 7
    %v290 = vsub.s32 0, %v289
    %v291 = vrot.slane %v287, %v290
    %292 = vmatprep.subr.mxu0 0.0
    %293 = vmatpush1.msra.mxu0 %v271
    %294 = vmatprep.subr.mxu0 0.0
    %295 = vmatpush1.msra.mxu0 %v272
    %296 = vmatprep.subr.mxu0 0.0
    %297 = vmatpush1.msra.mxu0 %v273
    %298 = vmatprep.subr.mxu0 0.0
    %299 = vmatpush1.msra.mxu0 %v274
    %300 = vmatprep.subr.mxu0 0.0
    %301 = vmatpush1.msra.mxu0 %v275
    %302 = vmatprep.subr.mxu0 0.0
    %303 = vmatpush1.msra.mxu0 %v276
    %304 = vmatprep.subr.mxu0 0.0
    %305 = vmatpush1.msra.mxu0 %v277
    %306 = vmatprep.subr.mxu0 0.0
    %307 = vmatpush1.msra.mxu0 %v278
    %308 = vmatprep.subr.mxu0 0.0
    %309 = vmatpush1.msra.mxu0 %v279
    %310 = vmatprep.subr.mxu0 0.0
    %311 = vmatpush1.msra.mxu0 %v280
    %312 = vmatprep.subr.mxu0 0.0
    %313 = vmatpush1.msra.mxu0 %v281
    %314 = vmatprep.subr.mxu0 0.0
    %315 = vmatpush1.msra.mxu0 %v282
    %316 = vmatprep.subr.mxu0 0.0
    %317 = vmatpush1.msra.mxu0 %v283
    %318 = vmatprep.subr.mxu0 0.0
    %319 = vmatpush1.msra.mxu0 %v284
    %320 = vmatprep.subr.mxu0 0.0
    %321 = vmatpush1.msra.mxu0 %v285
    %322 = vmatprep.subr.mxu0 0.0
    %323 = vmatpush1.msra.mxu0 %v286
    %324 = vmatprep.subr.mxu0 0.0
    %325 = vmatpush1.msra.mxu0 0.0
    %326 = vmatprep.subr.mxu0 0.0
    %327 = vmatpush1.msra.mxu0 0.0
    %328 = vmatprep.subr.mxu0 0.0
    %329 = vmatpush1.msra.mxu0 0.0
    %330 = vmatprep.subr.mxu0 0.0
    %331 = vmatpush1.msra.mxu0 0.0
    %332 = vmatprep.subr.mxu0 0.0
    %333 = vmatpush1.msra.mxu0 0.0
    %334 = vmatprep.subr.mxu0 0.0
    %335 = vmatpush1.msra.mxu0 0.0
    %336 = vmatprep.subr.mxu0 0.0
    %337 = vmatpush1.msra.mxu0 0.0
    %338 = vmatprep.subr.mxu0 0.0
    %339 = vmatpush1.msra.mxu0 0.0
    %340 = vmatprep.subr.mxu0 0.0
    %341 = vmatpush1.msra.mxu0 0.0
    %342 = vmatprep.subr.mxu0 0.0
    %343 = vmatpush1.msra.mxu0 0.0
    %344 = vmatprep.subr.mxu0 0.0
    %345 = vmatpush1.msra.mxu0 0.0
    %346 = vmatprep.subr.mxu0 0.0
    %347 = vmatpush1.msra.mxu0 0.0
    %348 = vmatprep.subr.mxu0 0.0
    %349 = vmatpush1.msra.mxu0 0.0
    %350 = vmatprep.subr.mxu0 0.0
    %351 = vmatpush1.msra.mxu0 0.0
    %352 = vmatprep.subr.mxu0 0.0
    %353 = vmatpush1.msra.mxu0 0.0
    %354 = vmatprep.subr.mxu0 0.0
    %355 = vmatpush1.msra.mxu0 0.0
    %356 = vmatprep.mubr.f32.mxu0 0.0
    %357 = vmatmul.mubr.f32.gmra.mrb[0].mxu0 %v269
    %v358 = vpop.f32.mrb[0].mxu0
    %v359 = vadd.f32 %v291, %v358
    %v360 = vpop.f32.mrb[0].mxu0
    %361 = vmatprep.mubr.f32.mxu0 0.0
    %362 = vmatmul.mubr.f32.gmra.mrb[0].mxu0 %v270
    %v363 = vpop.f32.mrb[0].mxu0
    %v364 = vadd.f32 %v291, %v363
    %v365 = vpop.f32.mrb[0].mxu0
    %366 = vdwg.mxu0
    %v367 = vlaneseq
    %v368 = vand.u32 %v367, 127
    %v369 = vtanh.pop %v359
    %v370 = vtanh.pop %v364
    %v371 = vadd.f32 %v369, 1.0
    %v372 = vadd.f32 %v370, 1.0
    %v373 = vmul.f32 %v371, 11.0
    %v374 = vmul.f32 %v372, 11.0
    %v375 = vadd.f32 %v373, -20.0
    %v376 = vadd.f32 %v374, -20.0
    %vm377 = vcmp.ge.s32.totalorder %v368, 4
    %vm378 = vcmp.lt.s32.totalorder %v368, 8
    %vm379 = vmand %vm377, %vm378
    %v380 = vsel %vm379, %v375, %v359
    %v381 = vsel %vm379, %v376, %v364
    %382 = vst [vmem:[#allocation7] sm:$0xff] %v380
    %383 = vst [vmem:[#allocation7 + $0x8] sm:$0xff] %v381
    // Predicated region
    $region18: #{tpu_custom_call.1} parent=1 // pred_check
      _
    $region19: #{tpu_custom_call.1} parent=1 // pred_check_branch
      %385 = sbr.rel (0) target = $region21
    $region20: #{tpu_custom_call.1} parent=1 // pred_region
      %s387 = ssub.s32 256, 256
      %388 = vsyncadd [#allocation4], %s387
      %s389 = sshll.u32 [#allocation7], 4
      %s390 = int_to_ptr.vmem [resolvable:$true] %s389
      %395 = dma.vmem_to_hbm [thread:$0]  %s390, 256, %s2, [#allocation4], 128, 128, 8
    $region21: #{tpu_custom_call.1} parent=1 // pred_fallthru
      _
    // Predicated region
    $region22: #{tpu_custom_call.1} parent=1 // pred_check
      _
    $region23: #{tpu_custom_call.1} parent=1 // pred_check_branch
      %397 = sbr.rel (0) target = $region25
    $region24: #{tpu_custom_call.1} parent=1 // pred_region
      %398 = dma.done [#allocation4], 256
    $region25: #{tpu_custom_call.1} parent=1 // pred_fallthru
      _
    %399 = vsyncpa [#allocation3], 1
    %400 = vsyncpa [#allocation6], 1
    %401 = vsyncpa [#allocation4], 1

</llo_original>
